<compile_context>
chip_gen: v5e
topology: v5e:2x2
jax: 0.10.0
libtpu: 0.0.40
codegen_flags: <defaults>
</compile_context>

<pallas_src>
import jax
import jax.numpy as jnp
from jax.experimental import pallas as pl
from jax.experimental.pallas import tpu as pltpu


# Fast-path gate: keep the full bf16 weight resident in VMEM when it is at
# most this many bytes (2 MiB -> H <= 1024).  Conservative enough to fit the
# default scoped-VMEM budget on every generation (v5e/v6e and v7x) without
# touching vmem_limit_bytes.
_RESIDENT_WEIGHT_BYTES = 2 * 1024 * 1024


def _pick_block(dim, target, *, align=8, min_grid=1):
    """Largest block <= target that divides `dim` and is `align`-aligned
    (or the full extent).  Optionally halves until >= min_grid grid steps."""
    t = min(target, dim)
    t = max(align, (t // align) * align)
    while t > align and dim % t != 0:
        t -= align
    if dim % t != 0:
        t = dim  # full extent is always a legal block shape
    while min_grid > 1 and dim // t < min_grid:
        cand = t // 2
        if cand >= align and cand % align == 0 and dim % cand == 0:
            t = cand
        else:
            break
    return t


def _res_linear_resident_kernel(x_ref, w_ref, b_ref, o_ref):
    # x_ref: [tm, H] original dtype (single read: feeds MXU and residual)
    # w_ref: [H, H]  bf16, already [in, out] -> plain dot, fetched once
    # b_ref: [1, H]  f32
    # o_ref: [tm, H] x.dtype
    x = x_ref[...]
    y = jnp.dot(x.astype(jnp.bfloat16), w_ref[...],
                preferred_element_type=jnp.float32)
    o_ref[...] = (x.astype(jnp.float32) + y + b_ref[...]).astype(o_ref.dtype)


def _res_linear_tiled_kernel(xk_ref, w_ref, b_ref, xr_ref, o_ref):
    # xk_ref: [tm, tk] bf16 x tile (matmul K slice)
    # w_ref:  [tk, tn] bf16 weight tile, already transposed to [K, N]
    # b_ref:  [1,  tn] f32 bias tile          (block index constant over k)
    # xr_ref: [tm, tn] original-dtype x tile   (block index constant over k)
    # o_ref:  [tm, tn] f32 output tile; resident across k -> accumulator
    k = pl.program_id(2)

    @pl.when(k == 0)
    def _init():
        o_ref[...] = jnp.zeros_like(o_ref)

    o_ref[...] += jnp.dot(xk_ref[...], w_ref[...],
                          preferred_element_type=jnp.float32)

    @pl.when(k == pl.num_programs(2) - 1)
    def _finalize():
        o_ref[...] += b_ref[...] + xr_ref[...].astype(jnp.float32)


def res_layer_forward(x, weight, bias, *, tm=256, tn=512, tk=1024,
                      force_general=False):
    """out = x + (x @ weight.T + bias), matching ResLayer(nn.Linear(H, H)).

    x:      (B, S, H)
    weight: (H, H)   -- PyTorch nn.Linear convention [out_features, in_features]
    bias:   (H,)
    """
    B, S, H = x.shape
    M = B * S
    x2d = x.reshape(M, H)
    out_dtype = x.dtype

    # One-time wrapper work (amortized over the whole batch): transpose the
    # PyTorch [out, in] weight to [in, out] = [K, N] and cast to bf16 so the
    # MXU gets bf16 operands with no per-tile transpose or per-step cast.
    w_kn = weight.T.astype(jnp.bfloat16)
    b2d = bias.reshape(1, H).astype(jnp.float32)

    use_resident = (not force_general) and (H * H * 2 <= _RESIDENT_WEIGHT_BYTES)

    if use_resident:
        # ---- Fast path: weight resident in VMEM, grid over rows only. ----
        tm_r = _pick_block(M, min(tm, 256), align=8, min_grid=2)
        assert M % tm_r == 0
        out2d = pl.pallas_call(
            _res_linear_resident_kernel,
            out_shape=jax.ShapeDtypeStruct((M, H), out_dtype),
            grid_spec=pltpu.PrefetchScalarGridSpec(
                num_scalar_prefetch=0,
                grid=(M // tm_r,),
                in_specs=[
                    pl.BlockSpec((tm_r, H), lambda i: (i, 0)),  # x (single read)
                    pl.BlockSpec((H, H), lambda i: (0, 0)),     # resident weight
                    pl.BlockSpec((1, H), lambda i: (0, 0)),     # bias
                ],
                out_specs=pl.BlockSpec((tm_r, H), lambda i: (i, 0)),
            ),
            compiler_params=pltpu.CompilerParams(
                dimension_semantics=("parallel",),
            ),
        )(x2d, w_kn, b2d)
        return out2d.reshape(B, S, H)

    # ---- General tiled path: 3-D grid, K reduction innermost. ----
    assert H % 128 == 0, "general tiled path needs H to be a multiple of 128"
    # TODO(synk): masked/padded path for M or H not divisible by the tiles.
    tm_g = _pick_block(M, tm, align=8, min_grid=2)
    tn_g = _pick_block(H, tn, align=128)
    tk_g = _pick_block(H, tk, align=128)
    assert M % tm_g == 0 and H % tn_g == 0 and H % tk_g == 0

    x_bf16 = x2d.astype(jnp.bfloat16)
    grid = (M // tm_g, H // tn_g, H // tk_g)

    out2d = pl.pallas_call(
        _res_linear_tiled_kernel,
        out_shape=jax.ShapeDtypeStruct((M, H), jnp.float32),
        grid_spec=pltpu.PrefetchScalarGridSpec(
            num_scalar_prefetch=0,
            grid=grid,
            in_specs=[
                pl.BlockSpec((tm_g, tk_g), lambda i, j, k: (i, k)),  # x bf16 (matmul)
                pl.BlockSpec((tk_g, tn_g), lambda i, j, k: (k, j)),  # W^T bf16 [K, N]
                pl.BlockSpec((1, tn_g), lambda i, j, k: (0, j)),     # bias f32
                pl.BlockSpec((tm_g, tn_g), lambda i, j, k: (i, j)),  # x f32 (residual)
            ],
            out_specs=pl.BlockSpec((tm_g, tn_g), lambda i, j, k: (i, j)),
        ),
        compiler_params=pltpu.CompilerParams(
            dimension_semantics=("parallel", "parallel", "arbitrary"),
        ),
    )(x_bf16, w_kn, b2d, x2d)

    return out2d.astype(out_dtype).reshape(B, S, H)


if __name__ == "__main__":
    key = jax.random.PRNGKey(0)
    k_x, k_w, k_b = jax.random.split(key, 3)

    # Small but lane-dense shapes: H is a multiple of 128 so tiles fill full
    # vregs / MXU lanes.  Fast path grid = (2,), general-path grid = (2, 1, 1).
    B, S, H = 2, 128, 256
    x = jax.random.normal(k_x, (B, S, H), dtype=jnp.float32)

    # Deterministic nn.Linear(H, H)-shaped parameters (synthetic, not a checkpoint).
    bound = 1.0 / (H ** 0.5)
    weight = jax.random.uniform(k_w, (H, H), minval=-bound, maxval=bound,
                                dtype=jnp.float32)
    bias = jax.random.uniform(k_b, (H,), minval=-bound, maxval=bound,
                              dtype=jnp.float32)

    # Reference 1: same bf16-matmul / f32-accumulate recipe as the kernels.
    y_bf16 = jnp.einsum("bsh,oh->bso",
                        x.astype(jnp.bfloat16), weight.astype(jnp.bfloat16),
                        preferred_element_type=jnp.float32)
    ref_bf16 = x + (y_bf16 + bias)
    # Reference 2: full-f32 ResLayer semantics (looser tol for bf16 MXU inputs).
    ref_f32 = x + (jnp.einsum("bsh,oh->bso", x, weight,
                              preferred_element_type=jnp.float32) + bias)

    # Weight-resident fast path (default for this H).
    out = jax.block_until_ready(res_layer_forward(x, weight, bias))
    assert out.shape == x.shape
    assert jnp.allclose(out, ref_bf16, atol=1e-3, rtol=1e-3)
    assert jnp.allclose(out, ref_f32, atol=3e-2, rtol=3e-2)

    # General tiled path (same semantics; exercised explicitly for coverage).
    out_g = jax.block_until_ready(
        res_layer_forward(x, weight, bias, force_general=True))
    assert out_g.shape == x.shape
    assert jnp.allclose(out_g, ref_bf16, atol=1e-3, rtol=1e-3)
    assert jnp.allclose(out_g, ref_f32, atol=3e-2, rtol=3e-2)

    print("KERNEL_OK")
</pallas_src>

<mosaic_0001>
module attributes {stable_mosaic.version = 11 : i64} {
  func.func @_res_linear_resident_kernel(%arg0: i32, %arg1: memref<128x256xf32, #tpu.memory_space<vmem>>, %arg2: memref<256x256xbf16, #tpu.memory_space<vmem>>, %arg3: memref<1x256xf32, #tpu.memory_space<vmem>>, %arg4: memref<128x256xf32, #tpu.memory_space<vmem>>) attributes {dimension_semantics = [#tpu.dimension_semantics<parallel>], iteration_bounds = array<i64: 2>, scalar_prefetch = 0 : i64, scratch_operands = 0 : i64, tpu.core_type = #tpu.core_type<tc>, window_params = [{transform_indices = @transform_0, window_bounds = array<i64: 128, 256>}, {pipeline_mode = #tpu.pipeline_mode<synchronous>, transform_indices = @transform_1, window_bounds = array<i64: 256, 256>}, {pipeline_mode = #tpu.pipeline_mode<synchronous>, transform_indices = @transform_2, window_bounds = array<i64: 1, 256>}, {transform_indices = @transform_3, window_bounds = array<i64: 128, 256>}]} {
    %c0 = arith.constant 0 : index
    %c0_0 = arith.constant 0 : index
    %0 = vector.load %arg1[%c0, %c0_0] : memref<128x256xf32, #tpu.memory_space<vmem>>, vector<128x256xf32>
    %1 = arith.truncf %0 : vector<128x256xf32> to vector<128x256xbf16>
    %c0_1 = arith.constant 0 : index
    %c0_2 = arith.constant 0 : index
    %2 = vector.load %arg2[%c0_1, %c0_2] : memref<256x256xbf16, #tpu.memory_space<vmem>>, vector<256x256xbf16>
    %cst = arith.constant dense<0.000000e+00> : vector<128x256xf32>
    %3 = tpu.matmul %1, %2, %cst {dimension_numbers = #tpu.dot_dimension_numbers<[1], [0], [0], [1], [0, 0, 1, 1], [], []>} : vector<128x256xbf16>, vector<256x256xbf16>, vector<128x256xf32> -> vector<128x256xf32>
    %4 = arith.addf %0, %3 : vector<128x256xf32>
    %c0_3 = arith.constant 0 : index
    %c0_4 = arith.constant 0 : index
    %5 = vector.load %arg3[%c0_3, %c0_4] : memref<1x256xf32, #tpu.memory_space<vmem>>, vector<1x256xf32>
    %6 = vector.broadcast %5 : vector<1x256xf32> to vector<128x256xf32>
    %7 = arith.addf %4, %6 : vector<128x256xf32>
    %c0_5 = arith.constant 0 : index
    %c0_6 = arith.constant 0 : index
    %8 = vector.load %arg4[%c0_5, %c0_6] : memref<128x256xf32, #tpu.memory_space<vmem>>, vector<128x256xf32>
    tpu.vector_store %arg4[%c0_5, %c0_6], %7 {strides = array<i32>} : memref<128x256xf32, #tpu.memory_space<vmem>>, vector<128x256xf32>,
    return
  }
  func.func @transform_0(%arg0: i32) -> (i32, i32) {
    %c0_i32 = arith.constant 0 : i32
    %c0_i32_0 = arith.constant 0 : i32
    return %arg0, %c0_i32 : i32, i32
  }
  func.func @transform_1(%arg0: i32) -> (i32, i32) {
    %c0_i32 = arith.constant 0 : i32
    %c0_i32_0 = arith.constant 0 : i32
    %c0_i32_1 = arith.constant 0 : i32
    return %c0_i32, %c0_i32_0 : i32, i32
  }
  func.func @transform_2(%arg0: i32) -> (i32, i32) {
    %c0_i32 = arith.constant 0 : i32
    %c0_i32_0 = arith.constant 0 : i32
    %c0_i32_1 = arith.constant 0 : i32
    return %c0_i32, %c0_i32_0 : i32, i32
  }
  func.func @transform_3(%arg0: i32) -> (i32, i32) {
    %c0_i32 = arith.constant 0 : i32
    %c0_i32_0 = arith.constant 0 : i32
    return %arg0, %c0_i32 : i32, i32
  }
}

</mosaic_0001>

<llo_original>
// kernel: tpu_custom_call.1
$region0: #{tpu_custom_call.1}
  #allocation0 [shape = 'u32[]', space=smem, size = 0x4, offset = 0x4, fixed_abs, tag = 'smem constant byte address 0x4 - core index']
  #allocation1 [shape = 'u32[72,128]{1,0:T(1,128)}', space=vmem, size = 0x9000, scoped, tag = 'internal scratch']
  %s0 = inlined_call_operand.hbm [shape: f32[256,256], index: 0, kind: input, shape index: {}]
  %s1 = inlined_call_operand.hbm [shape: bf16[256,256], index: 1, kind: input, shape index: {}]
  %s2 = inlined_call_operand.hbm [shape: f32[1,256], index: 2, kind: input, shape index: {}]
  %s3 = inlined_call_operand.hbm [shape: f32[256,256], index: 3, kind: output, shape index: {}]
  %s4 = sld [smem:[#allocation0]]
  $region57: #{tpu_custom_call.1} parent=0
    _
  %s6 = ssub.s32 1, %s4
  %s7 = scalar_select 0, %s6, %s4
  $region1: #{tpu_custom_call.1} parent=0
    #allocation2 [shape = 'u8[262144]{0}', space=vmem, size = 0x40000, scoped, tag = 'input window, operand 0']
    #allocation3 [shape = 's32[2]{0}', space=sflag, size = 0x8, scoped, tag = 'scoped memory for tpu_custom_call.1']
    #allocation4 [shape = 's32[2]{0}', space=sflag, size = 0x8, scoped, tag = 'scoped memory for tpu_custom_call.1']
    #allocation5 [shape = 'u8[131072]{0}', space=vmem, size = 0x20000, scoped, tag = 'input window, operand 1, single buffered']
    #allocation6 [shape = 's32[1]{0}', space=sflag, size = 0x4, scoped, tag = 'scoped memory for tpu_custom_call.1']
    #allocation7 [shape = 'u8[1024]{0}', space=vmem, size = 0x400, scoped, tag = 'input window, operand 2, single buffered']
    #allocation8 [shape = 'u8[262144]{0}', space=vmem, size = 0x40000, scoped, tag = 'output window, operand 0']
    %8 = vsyncpa [#allocation3], 0
    %s9 = scalar_lea.sflag [#allocation3], 1
    %10 = vsyncpa %s9, 0
    %11 = vsyncpa [#allocation6], 0
    %12 = vsyncpa [#allocation4], 0
    %s13 = scalar_lea.sflag [#allocation4], 1
    %14 = vsyncpa %s13, 0
    loop: start=0, step=1, limit=4
    $region2: #{tpu_custom_call.1} parent=1 // loop_pre_header
      _
    $region3: #{tpu_custom_call.1} parent=1 // loop_header
      %s16 = sphi 0, %s20
      %p17 = scmp.ge.s32.totalorder %s16, 4
      %s26 = sphi 0, %s28
      %s29 = sphi 0, %s26
      %s30 = sphi 0, %s29
      %s46 = sphi 0, %s30
      %s50 = sphi 0, %s50
      %s52 = sphi 0, %s50
      %s53 = sphi 0, %s52
      %s67 = sphi 0, %s53
      %s71 = sphi 0, %s71
      %s73 = sphi 0, %s71
      %s74 = sphi 0, %s73
      %s88 = sphi 0, %s74
      %s94 = sphi 0, %s96
      %s97 = sphi 0, %s94
      %s98 = sphi 0, %s97
      %s114 = sphi 0, %s98
    $region4: #{tpu_custom_call.1} parent=1 // loop_header_branch
      %19 = sbr.rel (%p17) target = $region8
    $region5: #{tpu_custom_call.1} parent=1 // loop_body
      %s21 = ssub.s32 %s16, 1
      %s22 = ssub.s32 %s16, 2
      %s23 = sadd.s32 %s16, 1
      %s24 = ssub.s32 %s16, %s23
      %p25 = scmp.eq.s32.totalorder %s24, 0
      %s27 = sadd.s32 %s26, 1
      %s28 = scalar_select %p25, %s26, %s27
      %p31 = pneg %p25
      %p32 = scmp.eq.s32.totalorder %s16, 1
      %p33 = por %p31, %p32
      %p34 = scmp.ne.s32.totalorder %s26, %s29
      %p35 = scmp.eq.s32.totalorder %s16, 0
      %p36 = por %p34, %p35
      %p37 = scmp.ne.s32.totalorder %s26, %s29
      %p38 = scmp.eq.s32.totalorder %s21, 1
      %p39 = por %p37, %p38
      %p40 = scmp.ne.s32.totalorder %s29, %s30
      %p41 = scmp.eq.s32.totalorder %s21, 0
      %p42 = por %p40, %p41
      %p43 = scmp.ne.s32.totalorder %s29, %s30
      %p44 = scmp.eq.s32.totalorder %s22, 1
      %p45 = por %p43, %p44
      %p47 = scmp.ne.s32.totalorder %s30, %s46
      %p48 = scmp.eq.s32.totalorder %s22, 0
      %p49 = por %p47, %p48
      %s51 = sadd.s32 %s50, 1
      %p54 = scmp.eq.s32.totalorder %s16, 1
      %p55 = scmp.ne.s32.totalorder %s50, %s52
      %p56 = scmp.eq.s32.totalorder %s16, 0
      %p57 = por %p55, %p56
      %p58 = scmp.ne.s32.totalorder %s50, %s52
      %p59 = scmp.eq.s32.totalorder %s21, 1
      %p60 = por %p58, %p59
      %p61 = scmp.ne.s32.totalorder %s52, %s53
      %p62 = scmp.eq.s32.totalorder %s21, 0
      %p63 = por %p61, %p62
      %p64 = scmp.ne.s32.totalorder %s52, %s53
      %p65 = scmp.eq.s32.totalorder %s22, 1
      %p66 = por %p64, %p65
      %p68 = scmp.ne.s32.totalorder %s53, %s67
      %p69 = scmp.eq.s32.totalorder %s22, 0
      %p70 = por %p68, %p69
      %s72 = sadd.s32 %s71, 1
      %p75 = scmp.eq.s32.totalorder %s16, 1
      %p76 = scmp.ne.s32.totalorder %s71, %s73
      %p77 = scmp.eq.s32.totalorder %s16, 0
      %p78 = por %p76, %p77
      %p79 = scmp.ne.s32.totalorder %s71, %s73
      %p80 = scmp.eq.s32.totalorder %s21, 1
      %p81 = por %p79, %p80
      %p82 = scmp.ne.s32.totalorder %s73, %s74
      %p83 = scmp.eq.s32.totalorder %s21, 0
      %p84 = por %p82, %p83
      %p85 = scmp.ne.s32.totalorder %s73, %s74
      %p86 = scmp.eq.s32.totalorder %s22, 1
      %p87 = por %p85, %p86
      %p89 = scmp.ne.s32.totalorder %s74, %s88
      %p90 = scmp.eq.s32.totalorder %s22, 0
      %p91 = por %p89, %p90
      %s92 = ssub.s32 %s16, %s23
      %p93 = scmp.eq.s32.totalorder %s92, 0
      %s95 = sadd.s32 %s94, 1
      %s96 = scalar_select %p93, %s94, %s95
      %p99 = pneg %p93
      %p100 = scmp.eq.s32.totalorder %s16, 1
      %p101 = por %p99, %p100
      %p102 = scmp.ne.s32.totalorder %s94, %s97
      %p103 = scmp.eq.s32.totalorder %s16, 0
      %p104 = por %p102, %p103
      %p105 = scmp.ne.s32.totalorder %s94, %s97
      %p106 = scmp.eq.s32.totalorder %s21, 1
      %p107 = por %p105, %p106
      %p108 = scmp.ne.s32.totalorder %s97, %s98
      %p109 = scmp.eq.s32.totalorder %s21, 0
      %p110 = por %p108, %p109
      %p111 = scmp.ne.s32.totalorder %s97, %s98
      %p112 = scmp.eq.s32.totalorder %s22, 1
      %p113 = por %p111, %p112
      %p115 = scmp.ne.s32.totalorder %s98, %s114
      %p116 = scmp.eq.s32.totalorder %s22, 0
      %p117 = por %p115, %p116
      %p118 = scmp.le.s32.totalorder 1, %s16
      %p119 = scmp.lt.s32.totalorder %s16, 3
      %p120 = pnand %p118, %p119
      %p121 = pneg %p120
      // Predicated region
      $region9: #{tpu_custom_call.1} parent=5 // pred_check
        _
      $region10: #{tpu_custom_call.1} parent=5 // pred_check_branch
        %123 = sbr.rel (%p120) target = $region12
      $region11: #{tpu_custom_call.1} parent=5 // pred_region
        %s124 = ssub.s32 %s16, 1
        // Predicated region
        $region13: #{tpu_custom_call.1} parent=11 // pred_check
          %p125 = pneg %p63
        $region14: #{tpu_custom_call.1} parent=11 // pred_check_branch
          %127 = sbr.rel (%p125) target = $region16
        $region15: #{tpu_custom_call.1} parent=11 // pred_region
          %129 = vsyncadd [#allocation6], 0
          %s130 = sshll.u32 %s1, 4
          %s131 = int_to_ptr.hbm [resolvable:$true] %s130
          %s132 = sshll.u32 [#allocation5], 4
          %s133 = int_to_ptr.vmem [resolvable:$true] %s132
          %138 = dma.hbm_to_vmem [thread:$0]  %s131, 4096, %s133, [#allocation6], 128, 128, 8
        $region16: #{tpu_custom_call.1} parent=11 // pred_fallthru
          _
        // Predicated region
        $region17: #{tpu_custom_call.1} parent=11 // pred_check
          %p139 = pneg %p84
        $region18: #{tpu_custom_call.1} parent=11 // pred_check_branch
          %141 = sbr.rel (%p139) target = $region20
        $region19: #{tpu_custom_call.1} parent=11 // pred_region
          %143 = vsyncadd [#allocation6], 0
          %s145 = sshll.u32 %s2, 4
          %s146 = int_to_ptr.hbm [resolvable:$true] %s145
          %s147 = sshll.u32 [#allocation7], 4
          %s148 = int_to_ptr.vmem [resolvable:$true] %s147
          %150 = dma.hbm_to_vmem [thread:$0]  %s146, 32, %s148, [#allocation6]
        $region20: #{tpu_custom_call.1} parent=11 // pred_fallthru
          _
      $region12: #{tpu_custom_call.1} parent=5 // pred_fallthru
        _
      %p151 = scmp.lt.s32.totalorder %s16, 2
      // Predicated region
      $region21: #{tpu_custom_call.1} parent=5 // pred_check
        %p152 = pneg %p151
      $region22: #{tpu_custom_call.1} parent=5 // pred_check_branch
        %154 = sbr.rel (%p152) target = $region24
      $region23: #{tpu_custom_call.1} parent=5 // pred_region
        // Predicated region
        $region25: #{tpu_custom_call.1} parent=23 // pred_check
          %p155 = pneg %p36
        $region26: #{tpu_custom_call.1} parent=23 // pred_check_branch
          %157 = sbr.rel (%p155) target = $region28
        $region27: #{tpu_custom_call.1} parent=23 // pred_region
          %s158 = sand.u32 %s26, 1
          %s159 = scalar_lea.sflag [#allocation3], %s158
          %s160 = sand.u32 %s26, 1
          %s161 = smul.addr %s160, 256
          %s162 = scalar_lea.vmem [#allocation2], %s161
          %s163 = smul.u32 16, %s16
          %165 = vsyncadd %s159, 0
          %s166 = smul.addr %s163, 2
          %s167 = smul.addr %s166, 8
          %s168 = scalar_lea.hbm %s0, %s167
          %s169 = sshll.u32 %s168, 4
          %s170 = int_to_ptr.hbm [resolvable:$true] %s169
          %s171 = sshll.u32 %s162, 4
          %s172 = int_to_ptr.vmem [resolvable:$true] %s171
          %177 = dma.hbm_to_vmem [thread:$0]  %s170, 4096, %s172, %s159, 256, 256, 16
        $region28: #{tpu_custom_call.1} parent=23 // pred_fallthru
          _
      $region24: #{tpu_custom_call.1} parent=5 // pred_fallthru
        _
      %p178 = scmp.le.s32.totalorder 1, %s16
      %p179 = scmp.lt.s32.totalorder %s16, 3
      %p180 = pnand %p178, %p179
      %p181 = pneg %p180
      // Predicated region
      $region29: #{tpu_custom_call.1} parent=5 // pred_check
        _
      $region30: #{tpu_custom_call.1} parent=5 // pred_check_branch
        %183 = sbr.rel (%p180) target = $region32
      $region31: #{tpu_custom_call.1} parent=5 // pred_region
        %s184 = ssub.s32 %s16, 1
        %s185 = sand.u32 %s29, 1
        %s186 = scalar_lea.sflag [#allocation3], %s185
        %s187 = sand.u32 %s29, 1
        %s188 = smul.addr %s187, 256
        %s189 = scalar_lea.vmem [#allocation2], %s188
        // Predicated region
        $region33: #{tpu_custom_call.1} parent=31 // pred_check
          %p190 = pneg %p42
        $region34: #{tpu_custom_call.1} parent=31 // pred_check_branch
          %192 = sbr.rel (%p190) target = $region36
        $region35: #{tpu_custom_call.1} parent=31 // pred_region
          %194 = dma.done %s186, 4096
        $region36: #{tpu_custom_call.1} parent=31 // pred_fallthru
          _
        // Predicated region
        $region37: #{tpu_custom_call.1} parent=31 // pred_check
          %p195 = pneg %p63
        $region38: #{tpu_custom_call.1} parent=31 // pred_check_branch
          %197 = sbr.rel (%p195) target = $region40
        $region39: #{tpu_custom_call.1} parent=31 // pred_region
          %199 = dma.done [#allocation6], 4096
        $region40: #{tpu_custom_call.1} parent=31 // pred_fallthru
          _
        // Predicated region
        $region41: #{tpu_custom_call.1} parent=31 // pred_check
          %p200 = pneg %p84
        $region42: #{tpu_custom_call.1} parent=31 // pred_check_branch
          %202 = sbr.rel (%p200) target = $region44
        $region43: #{tpu_custom_call.1} parent=31 // pred_region
          %204 = dma.done [#allocation6], 32
        $region44: #{tpu_custom_call.1} parent=31 // pred_fallthru
          _
        %s205 = sand.u32 %s29, 1
        %s206 = scalar_lea.sflag [#allocation3], %s205
        %s207 = sand.u32 %s29, 1
        %s208 = smul.addr %s207, 256
        %s209 = scalar_lea.vmem [#allocation2], %s208
        %p210 = pneg %p42
        %p211 = pneg %p39
        %p212 = pneg %p63
        %p213 = pneg %p60
        %p214 = pneg %p84
        %p215 = pneg %p81
        %p216 = pneg %p110
        %p217 = pneg %p107
        %s218 = sand.u32 %s97, 1
        %s219 = scalar_lea.sflag [#allocation4], %s218
        %s220 = sand.u32 %s97, 1
        %s221 = smul.addr %s220, 256
        %s222 = scalar_lea.vmem [#allocation8], %s221
        %s223 = smul.u32 16, %s21
        %s224 = smul.u32 16, %s21
        %v225 = vld [vmem:[%s189] sm:$0xff]
        %v226 = vld [vmem:[%s189 + $0x8] sm:$0xff]
        %v227 = vld [vmem:[%s189 + $0x10] sm:$0xff]
        %v228 = vld [vmem:[%s189 + $0x18] sm:$0xff]
        %v229 = vld [vmem:[%s189 + $0x20] sm:$0xff]
        %v230 = vld [vmem:[%s189 + $0x28] sm:$0xff]
        %v231 = vld [vmem:[%s189 + $0x30] sm:$0xff]
        %v232 = vld [vmem:[%s189 + $0x38] sm:$0xff]
        %v233 = vld [vmem:[%s189 + $0x40] sm:$0xff]
        %v234 = vld [vmem:[%s189 + $0x48] sm:$0xff]
        %v235 = vld [vmem:[%s189 + $0x50] sm:$0xff]
        %v236 = vld [vmem:[%s189 + $0x58] sm:$0xff]
        %v237 = vld [vmem:[%s189 + $0x60] sm:$0xff]
        %v238 = vld [vmem:[%s189 + $0x68] sm:$0xff]
        %v239 = vld [vmem:[%s189 + $0x70] sm:$0xff]
        %v240 = vld [vmem:[%s189 + $0x78] sm:$0xff]
        %v241 = vld [vmem:[%s189 + $0x80] sm:$0xff]
        %v242 = vld [vmem:[%s189 + $0x88] sm:$0xff]
        %v243 = vld [vmem:[%s189 + $0x90] sm:$0xff]
        %v244 = vld [vmem:[%s189 + $0x98] sm:$0xff]
        %v245 = vld [vmem:[%s189 + $0xa0] sm:$0xff]
        %v246 = vld [vmem:[%s189 + $0xa8] sm:$0xff]
        %v247 = vld [vmem:[%s189 + $0xb0] sm:$0xff]
        %v248 = vld [vmem:[%s189 + $0xb8] sm:$0xff]
        %v249 = vld [vmem:[%s189 + $0xc0] sm:$0xff]
        %v250 = vld [vmem:[%s189 + $0xc8] sm:$0xff]
        %v251 = vld [vmem:[%s189 + $0xd0] sm:$0xff]
        %v252 = vld [vmem:[%s189 + $0xd8] sm:$0xff]
        %v253 = vld [vmem:[%s189 + $0xe0] sm:$0xff]
        %v254 = vld [vmem:[%s189 + $0xe8] sm:$0xff]
        %v255 = vld [vmem:[%s189 + $0xf0] sm:$0xff]
        %v256 = vld [vmem:[%s189 + $0xf8] sm:$0xff]
        %v257 = vpack.c.bf16 %v227, %v225
        %v258 = vpack.c.bf16 %v228, %v226
        %v259 = vpack.c.bf16 %v231, %v229
        %v260 = vpack.c.bf16 %v232, %v230
        %v261 = vpack.c.bf16 %v235, %v233
        %v262 = vpack.c.bf16 %v236, %v234
        %v263 = vpack.c.bf16 %v239, %v237
        %v264 = vpack.c.bf16 %v240, %v238
        %v265 = vpack.c.bf16 %v243, %v241
        %v266 = vpack.c.bf16 %v244, %v242
        %v267 = vpack.c.bf16 %v247, %v245
        %v268 = vpack.c.bf16 %v248, %v246
        %v269 = vpack.c.bf16 %v251, %v249
        %v270 = vpack.c.bf16 %v252, %v250
        %v271 = vpack.c.bf16 %v255, %v253
        %v272 = vpack.c.bf16 %v256, %v254
        %v273 = vld [vmem:[#allocation5] sm:$0xff]
        %v274 = vld [vmem:[#allocation5 + $0x8] sm:$0xff]
        %v275 = vld [vmem:[#allocation5 + $0x10] sm:$0xff]
        %v276 = vld [vmem:[#allocation5 + $0x18] sm:$0xff]
        %v277 = vld [vmem:[#allocation5 + $0x20] sm:$0xff]
        %v278 = vld [vmem:[#allocation5 + $0x28] sm:$0xff]
        %v279 = vld [vmem:[#allocation5 + $0x30] sm:$0xff]
        %v280 = vld [vmem:[#allocation5 + $0x38] sm:$0xff]
        %v281 = vld [vmem:[#allocation5 + $0x40] sm:$0xff]
        %v282 = vld [vmem:[#allocation5 + $0x48] sm:$0xff]
        %v283 = vld [vmem:[#allocation5 + $0x50] sm:$0xff]
        %v284 = vld [vmem:[#allocation5 + $0x58] sm:$0xff]
        %v285 = vld [vmem:[#allocation5 + $0x60] sm:$0xff]
        %v286 = vld [vmem:[#allocation5 + $0x68] sm:$0xff]
        %v287 = vld [vmem:[#allocation5 + $0x70] sm:$0xff]
        %v288 = vld [vmem:[#allocation5 + $0x78] sm:$0xff]
        %v289 = vld [vmem:[#allocation5 + $0x80] sm:$0xff]
        %v290 = vld [vmem:[#allocation5 + $0x88] sm:$0xff]
        %v291 = vld [vmem:[#allocation5 + $0x90] sm:$0xff]
        %v292 = vld [vmem:[#allocation5 + $0x98] sm:$0xff]
        %v293 = vld [vmem:[#allocation5 + $0xa0] sm:$0xff]
        %v294 = vld [vmem:[#allocation5 + $0xa8] sm:$0xff]
        %v295 = vld [vmem:[#allocation5 + $0xb0] sm:$0xff]
        %v296 = vld [vmem:[#allocation5 + $0xb8] sm:$0xff]
        %v297 = vld [vmem:[#allocation5 + $0xc0] sm:$0xff]
        %v298 = vld [vmem:[#allocation5 + $0xc8] sm:$0xff]
        %v299 = vld [vmem:[#allocation5 + $0xd0] sm:$0xff]
        %v300 = vld [vmem:[#allocation5 + $0xd8] sm:$0xff]
        %v301 = vld [vmem:[#allocation5 + $0xe0] sm:$0xff]
        %v302 = vld [vmem:[#allocation5 + $0xe8] sm:$0xff]
        %v303 = vld [vmem:[#allocation5 + $0xf0] sm:$0xff]
        %v304 = vld [vmem:[#allocation5 + $0xf8] sm:$0xff]
        %v337 = vunpack.c.l.b16 %v273
        %v338 = vunpack.c.h.b16 %v273
        %v339 = vunpack.c.l.b16 %v274
        %v340 = vunpack.c.h.b16 %v274
        %v341 = vunpack.c.l.b16 %v275
        %v342 = vunpack.c.h.b16 %v275
        %v343 = vunpack.c.l.b16 %v276
        %v344 = vunpack.c.h.b16 %v276
        %v345 = vunpack.c.l.b16 %v277
        %v346 = vunpack.c.h.b16 %v277
        %v347 = vunpack.c.l.b16 %v278
        %v348 = vunpack.c.h.b16 %v278
        %v349 = vunpack.c.l.b16 %v279
        %v350 = vunpack.c.h.b16 %v279
        %v351 = vunpack.c.l.b16 %v280
        %v352 = vunpack.c.h.b16 %v280
        %v353 = vunpack.c.l.b16 %v281
        %v354 = vunpack.c.h.b16 %v281
        %v355 = vunpack.c.l.b16 %v282
        %v356 = vunpack.c.h.b16 %v282
        %v357 = vunpack.c.l.b16 %v283
        %v358 = vunpack.c.h.b16 %v283
        %v359 = vunpack.c.l.b16 %v284
        %v360 = vunpack.c.h.b16 %v284
        %v361 = vunpack.c.l.b16 %v285
        %v362 = vunpack.c.h.b16 %v285
        %v363 = vunpack.c.l.b16 %v286
        %v364 = vunpack.c.h.b16 %v286
        %v365 = vunpack.c.l.b16 %v287
        %v366 = vunpack.c.h.b16 %v287
        %v367 = vunpack.c.l.b16 %v288
        %v368 = vunpack.c.h.b16 %v288
        %v369 = vunpack.c.l.b16 %v289
        %v370 = vunpack.c.h.b16 %v289
        %v371 = vunpack.c.l.b16 %v290
        %v372 = vunpack.c.h.b16 %v290
        %v373 = vunpack.c.l.b16 %v291
        %v374 = vunpack.c.h.b16 %v291
        %v375 = vunpack.c.l.b16 %v292
        %v376 = vunpack.c.h.b16 %v292
        %v377 = vunpack.c.l.b16 %v293
        %v378 = vunpack.c.h.b16 %v293
        %v379 = vunpack.c.l.b16 %v294
        %v380 = vunpack.c.h.b16 %v294
        %v381 = vunpack.c.l.b16 %v295
        %v382 = vunpack.c.h.b16 %v295
        %v383 = vunpack.c.l.b16 %v296
        %v384 = vunpack.c.h.b16 %v296
        %v385 = vunpack.c.l.b16 %v297
        %v386 = vunpack.c.h.b16 %v297
        %v387 = vunpack.c.l.b16 %v298
        %v388 = vunpack.c.h.b16 %v298
        %v389 = vunpack.c.l.b16 %v299
        %v390 = vunpack.c.h.b16 %v299
        %v391 = vunpack.c.l.b16 %v300
        %v392 = vunpack.c.h.b16 %v300
        %v393 = vunpack.c.l.b16 %v301
        %v394 = vunpack.c.h.b16 %v301
        %v395 = vunpack.c.l.b16 %v302
        %v396 = vunpack.c.h.b16 %v302
        %v397 = vunpack.c.l.b16 %v303
        %v398 = vunpack.c.h.b16 %v303
        %v399 = vunpack.c.l.b16 %v304
        %v400 = vunpack.c.h.b16 %v304
        %v401 = vpack.c.b16 %v339, %v337
        %v402 = vpack.c.b16 %v340, %v338
        %v403 = vpack.c.b16 %v343, %v341
        %v404 = vpack.c.b16 %v344, %v342
        %v405 = vpack.c.b16 %v347, %v345
        %v406 = vpack.c.b16 %v348, %v346
        %v407 = vpack.c.b16 %v351, %v349
        %v408 = vpack.c.b16 %v352, %v350
        %v409 = vpack.c.b16 %v355, %v353
        %v410 = vpack.c.b16 %v356, %v354
        %v411 = vpack.c.b16 %v359, %v357
        %v412 = vpack.c.b16 %v360, %v358
        %v413 = vpack.c.b16 %v363, %v361
        %v414 = vpack.c.b16 %v364, %v362
        %v415 = vpack.c.b16 %v367, %v365
        %v416 = vpack.c.b16 %v368, %v366
        %v417 = vpack.c.b16 %v371, %v369
        %v418 = vpack.c.b16 %v372, %v370
        %v419 = vpack.c.b16 %v375, %v373
        %v420 = vpack.c.b16 %v376, %v374
        %v421 = vpack.c.b16 %v379, %v377
        %v422 = vpack.c.b16 %v380, %v378
        %v423 = vpack.c.b16 %v383, %v381
        %v424 = vpack.c.b16 %v384, %v382
        %v425 = vpack.c.b16 %v387, %v385
        %v426 = vpack.c.b16 %v388, %v386
        %v427 = vpack.c.b16 %v391, %v389
        %v428 = vpack.c.b16 %v392, %v390
        %v429 = vpack.c.b16 %v395, %v393
        %v430 = vpack.c.b16 %v396, %v394
        %v431 = vpack.c.b16 %v399, %v397
        %v432 = vpack.c.b16 %v400, %v398
        %465 = vmatpush.bf16.msra.mxu0 %v415
        %466 = vmatpush.bf16.msra.mxu0 %v413
        %467 = vmatpush.bf16.msra.mxu0 %v411
        %468 = vmatpush.bf16.msra.mxu0 %v409
        %469 = vmatpush.bf16.msra.mxu0 %v407
        %470 = vmatpush.bf16.msra.mxu0 %v405
        %471 = vmatpush.bf16.msra.mxu0 %v403
        %472 = vmatpush.bf16.msra.mxu0 %v401
        %473 = vmatmul.bf16.gmra.mxu0 %v257
        %v474 = vpop.f32.mrf.mxu0
        %v475 = vadd.f32 0.0, %v474
        %v476 = vpop.f32.mrf.mxu0
        %v477 = vadd.f32 0.0, %v476
        %478 = vmatmul.bf16.gmra.mxu0 %v259
        %v479 = vpop.f32.mrf.mxu0
        %v480 = vadd.f32 0.0, %v479
        %v481 = vpop.f32.mrf.mxu0
        %v482 = vadd.f32 0.0, %v481
        %483 = vmatmul.bf16.gmra.mxu0 %v261
        %v484 = vpop.f32.mrf.mxu0
        %v485 = vadd.f32 0.0, %v484
        %v486 = vpop.f32.mrf.mxu0
        %v487 = vadd.f32 0.0, %v486
        %488 = vmatmul.bf16.gmra.mxu0 %v263
        %v489 = vpop.f32.mrf.mxu0
        %v490 = vadd.f32 0.0, %v489
        %v491 = vpop.f32.mrf.mxu0
        %v492 = vadd.f32 0.0, %v491
        %493 = vmatmul.bf16.gmra.mxu0 %v265
        %v494 = vpop.f32.mrf.mxu0
        %v495 = vadd.f32 0.0, %v494
        %v496 = vpop.f32.mrf.mxu0
        %v497 = vadd.f32 0.0, %v496
        %498 = vmatmul.bf16.gmra.mxu0 %v267
        %v499 = vpop.f32.mrf.mxu0
        %v500 = vadd.f32 0.0, %v499
        %v501 = vpop.f32.mrf.mxu0
        %v502 = vadd.f32 0.0, %v501
        %503 = vmatmul.bf16.gmra.mxu0 %v269
        %v504 = vpop.f32.mrf.mxu0
        %v505 = vadd.f32 0.0, %v504
        %v506 = vpop.f32.mrf.mxu0
        %v507 = vadd.f32 0.0, %v506
        %508 = vmatmul.bf16.gmra.mxu0 %v271
        %v509 = vpop.f32.mrf.mxu0
        %v510 = vadd.f32 0.0, %v509
        %v511 = vpop.f32.mrf.mxu0
        %v512 = vadd.f32 0.0, %v511
        %513 = vdwg.mxu0
        %514 = vmatpush.bf16.msra.mxu0 %v431
        %515 = vmatpush.bf16.msra.mxu0 %v429
        %516 = vmatpush.bf16.msra.mxu0 %v427
        %517 = vmatpush.bf16.msra.mxu0 %v425
        %518 = vmatpush.bf16.msra.mxu0 %v423
        %519 = vmatpush.bf16.msra.mxu0 %v421
        %520 = vmatpush.bf16.msra.mxu0 %v419
        %521 = vmatpush.bf16.msra.mxu0 %v417
        %522 = vmatmul.bf16.gmra.mxu0 %v258
        %v523 = vpop.f32.mrf.mxu0
        %v524 = vadd.f32 %v475, %v523
        %v525 = vpop.f32.mrf.mxu0
        %v526 = vadd.f32 %v477, %v525
        %527 = vmatmul.bf16.gmra.mxu0 %v260
        %v528 = vpop.f32.mrf.mxu0
        %v529 = vadd.f32 %v480, %v528
        %v530 = vpop.f32.mrf.mxu0
        %v531 = vadd.f32 %v482, %v530
        %532 = vmatmul.bf16.gmra.mxu0 %v262
        %v533 = vpop.f32.mrf.mxu0
        %v534 = vadd.f32 %v485, %v533
        %v535 = vpop.f32.mrf.mxu0
        %v536 = vadd.f32 %v487, %v535
        %537 = vmatmul.bf16.gmra.mxu0 %v264
        %v538 = vpop.f32.mrf.mxu0
        %v539 = vadd.f32 %v490, %v538
        %v540 = vpop.f32.mrf.mxu0
        %v541 = vadd.f32 %v492, %v540
        %542 = vmatmul.bf16.gmra.mxu0 %v266
        %v543 = vpop.f32.mrf.mxu0
        %v544 = vadd.f32 %v495, %v543
        %v545 = vpop.f32.mrf.mxu0
        %v546 = vadd.f32 %v497, %v545
        %547 = vmatmul.bf16.gmra.mxu0 %v268
        %v548 = vpop.f32.mrf.mxu0
        %v549 = vadd.f32 %v500, %v548
        %v550 = vpop.f32.mrf.mxu0
        %v551 = vadd.f32 %v502, %v550
        %552 = vmatmul.bf16.gmra.mxu0 %v270
        %v553 = vpop.f32.mrf.mxu0
        %v554 = vadd.f32 %v505, %v553
        %v555 = vpop.f32.mrf.mxu0
        %v556 = vadd.f32 %v507, %v555
        %557 = vmatmul.bf16.gmra.mxu0 %v272
        %v558 = vpop.f32.mrf.mxu0
        %v559 = vadd.f32 %v510, %v558
        %v560 = vpop.f32.mrf.mxu0
        %v561 = vadd.f32 %v512, %v560
        %562 = vdwg.mxu0
        %563 = vmatpush.bf16.msra.mxu0 %v416
        %564 = vmatpush.bf16.msra.mxu0 %v414
        %565 = vmatpush.bf16.msra.mxu0 %v412
        %566 = vmatpush.bf16.msra.mxu0 %v410
        %567 = vmatpush.bf16.msra.mxu0 %v408
        %568 = vmatpush.bf16.msra.mxu0 %v406
        %569 = vmatpush.bf16.msra.mxu0 %v404
        %570 = vmatpush.bf16.msra.mxu0 %v402
        %571 = vmatmul.bf16.gmra.mxu0 %v257
        %v572 = vpop.f32.mrf.mxu0
        %v573 = vadd.f32 0.0, %v572
        %v574 = vpop.f32.mrf.mxu0
        %v575 = vadd.f32 0.0, %v574
        %576 = vmatmul.bf16.gmra.mxu0 %v259
        %v577 = vpop.f32.mrf.mxu0
        %v578 = vadd.f32 0.0, %v577
        %v579 = vpop.f32.mrf.mxu0
        %v580 = vadd.f32 0.0, %v579
        %581 = vmatmul.bf16.gmra.mxu0 %v261
        %v582 = vpop.f32.mrf.mxu0
        %v583 = vadd.f32 0.0, %v582
        %v584 = vpop.f32.mrf.mxu0
        %v585 = vadd.f32 0.0, %v584
        %586 = vmatmul.bf16.gmra.mxu0 %v263
        %v587 = vpop.f32.mrf.mxu0
        %v588 = vadd.f32 0.0, %v587
        %v589 = vpop.f32.mrf.mxu0
        %v590 = vadd.f32 0.0, %v589
        %591 = vmatmul.bf16.gmra.mxu0 %v265
        %v592 = vpop.f32.mrf.mxu0
        %v593 = vadd.f32 0.0, %v592
        %v594 = vpop.f32.mrf.mxu0
        %v595 = vadd.f32 0.0, %v594
        %596 = vmatmul.bf16.gmra.mxu0 %v267
        %v597 = vpop.f32.mrf.mxu0
        %v598 = vadd.f32 0.0, %v597
        %v599 = vpop.f32.mrf.mxu0
        %v600 = vadd.f32 0.0, %v599
        %601 = vmatmul.bf16.gmra.mxu0 %v269
        %v602 = vpop.f32.mrf.mxu0
        %v603 = vadd.f32 0.0, %v602
        %v604 = vpop.f32.mrf.mxu0
        %v605 = vadd.f32 0.0, %v604
        %606 = vmatmul.bf16.gmra.mxu0 %v271
        %v607 = vpop.f32.mrf.mxu0
        %v608 = vadd.f32 0.0, %v607
        %v609 = vpop.f32.mrf.mxu0
        %v610 = vadd.f32 0.0, %v609
        %611 = vdwg.mxu0
        %612 = vmatpush.bf16.msra.mxu0 %v432
        %613 = vmatpush.bf16.msra.mxu0 %v430
        %614 = vmatpush.bf16.msra.mxu0 %v428
        %615 = vmatpush.bf16.msra.mxu0 %v426
        %616 = vmatpush.bf16.msra.mxu0 %v424
        %617 = vmatpush.bf16.msra.mxu0 %v422
        %618 = vmatpush.bf16.msra.mxu0 %v420
        %619 = vmatpush.bf16.msra.mxu0 %v418
        %620 = vmatmul.bf16.gmra.mxu0 %v258
        %v621 = vpop.f32.mrf.mxu0
        %v622 = vadd.f32 %v573, %v621
        %v623 = vpop.f32.mrf.mxu0
        %v624 = vadd.f32 %v575, %v623
        %625 = vmatmul.bf16.gmra.mxu0 %v260
        %v626 = vpop.f32.mrf.mxu0
        %v627 = vadd.f32 %v578, %v626
        %v628 = vpop.f32.mrf.mxu0
        %v629 = vadd.f32 %v580, %v628
        %630 = vmatmul.bf16.gmra.mxu0 %v262
        %v631 = vpop.f32.mrf.mxu0
        %v632 = vadd.f32 %v583, %v631
        %v633 = vpop.f32.mrf.mxu0
        %v634 = vadd.f32 %v585, %v633
        %635 = vmatmul.bf16.gmra.mxu0 %v264
        %v636 = vpop.f32.mrf.mxu0
        %v637 = vadd.f32 %v588, %v636
        %v638 = vpop.f32.mrf.mxu0
        %v639 = vadd.f32 %v590, %v638
        %640 = vmatmul.bf16.gmra.mxu0 %v266
        %v641 = vpop.f32.mrf.mxu0
        %v642 = vadd.f32 %v593, %v641
        %v643 = vpop.f32.mrf.mxu0
        %v644 = vadd.f32 %v595, %v643
        %645 = vmatmul.bf16.gmra.mxu0 %v268
        %v646 = vpop.f32.mrf.mxu0
        %v647 = vadd.f32 %v598, %v646
        %v648 = vpop.f32.mrf.mxu0
        %v649 = vadd.f32 %v600, %v648
        %650 = vmatmul.bf16.gmra.mxu0 %v270
        %v651 = vpop.f32.mrf.mxu0
        %v652 = vadd.f32 %v603, %v651
        %v653 = vpop.f32.mrf.mxu0
        %v654 = vadd.f32 %v605, %v653
        %655 = vmatmul.bf16.gmra.mxu0 %v272
        %v656 = vpop.f32.mrf.mxu0
        %v657 = vadd.f32 %v608, %v656
        %v658 = vpop.f32.mrf.mxu0
        %v659 = vadd.f32 %v610, %v658
        %660 = vdwg.mxu0
        %v661 = vadd.f32 %v225, %v524
        %v662 = vadd.f32 %v226, %v622
        %v663 = vadd.f32 %v227, %v526
        %v664 = vadd.f32 %v228, %v624
        %v665 = vadd.f32 %v229, %v529
        %v666 = vadd.f32 %v230, %v627
        %v667 = vadd.f32 %v231, %v531
        %v668 = vadd.f32 %v232, %v629
        %v669 = vadd.f32 %v233, %v534
        %v670 = vadd.f32 %v234, %v632
        %v671 = vadd.f32 %v235, %v536
        %v672 = vadd.f32 %v236, %v634
        %v673 = vadd.f32 %v237, %v539
        %v674 = vadd.f32 %v238, %v637
        %v675 = vadd.f32 %v239, %v541
        %v676 = vadd.f32 %v240, %v639
        %v677 = vadd.f32 %v241, %v544
        %v678 = vadd.f32 %v242, %v642
        %v679 = vadd.f32 %v243, %v546
        %v680 = vadd.f32 %v244, %v644
        %v681 = vadd.f32 %v245, %v549
        %v682 = vadd.f32 %v246, %v647
        %v683 = vadd.f32 %v247, %v551
        %v684 = vadd.f32 %v248, %v649
        %v685 = vadd.f32 %v249, %v554
        %v686 = vadd.f32 %v250, %v652
        %v687 = vadd.f32 %v251, %v556
        %v688 = vadd.f32 %v252, %v654
        %v689 = vadd.f32 %v253, %v559
        %v690 = vadd.f32 %v254, %v657
        %v691 = vadd.f32 %v255, %v561
        %v692 = vadd.f32 %v256, %v659
        %v693 = vld [vmem:[#allocation7] sm:$0x3]
        %v695 = vperm.slane %v693, 0
        %v696 = vperm.slane %v693, 1
        %v699 = vadd.f32 %v661, %v695
        %v700 = vadd.f32 %v662, %v696
        %v701 = vadd.f32 %v663, %v695
        %v702 = vadd.f32 %v664, %v696
        %v703 = vadd.f32 %v665, %v695
        %v704 = vadd.f32 %v666, %v696
        %v705 = vadd.f32 %v667, %v695
        %v706 = vadd.f32 %v668, %v696
        %v707 = vadd.f32 %v669, %v695
        %v708 = vadd.f32 %v670, %v696
        %v709 = vadd.f32 %v671, %v695
        %v710 = vadd.f32 %v672, %v696
        %v711 = vadd.f32 %v673, %v695
        %v712 = vadd.f32 %v674, %v696
        %v713 = vadd.f32 %v675, %v695
        %v714 = vadd.f32 %v676, %v696
        %v715 = vadd.f32 %v677, %v695
        %v716 = vadd.f32 %v678, %v696
        %v717 = vadd.f32 %v679, %v695
        %v718 = vadd.f32 %v680, %v696
        %v719 = vadd.f32 %v681, %v695
        %v720 = vadd.f32 %v682, %v696
        %v721 = vadd.f32 %v683, %v695
        %v722 = vadd.f32 %v684, %v696
        %v723 = vadd.f32 %v685, %v695
        %v724 = vadd.f32 %v686, %v696
        %v725 = vadd.f32 %v687, %v695
        %v726 = vadd.f32 %v688, %v696
        %v727 = vadd.f32 %v689, %v695
        %v728 = vadd.f32 %v690, %v696
        %v729 = vadd.f32 %v691, %v695
        %v730 = vadd.f32 %v692, %v696
        %731 = vst [vmem:[%s222] sm:$0xff] %v699
        %732 = vst [vmem:[%s222 + $0x8] sm:$0xff] %v700
        %733 = vst [vmem:[%s222 + $0x10] sm:$0xff] %v701
        %734 = vst [vmem:[%s222 + $0x18] sm:$0xff] %v702
        %735 = vst [vmem:[%s222 + $0x20] sm:$0xff] %v703
        %736 = vst [vmem:[%s222 + $0x28] sm:$0xff] %v704
        %737 = vst [vmem:[%s222 + $0x30] sm:$0xff] %v705
        %738 = vst [vmem:[%s222 + $0x38] sm:$0xff] %v706
        %739 = vst [vmem:[%s222 + $0x40] sm:$0xff] %v707
        %740 = vst [vmem:[%s222 + $0x48] sm:$0xff] %v708
        %741 = vst [vmem:[%s222 + $0x50] sm:$0xff] %v709
        %742 = vst [vmem:[%s222 + $0x58] sm:$0xff] %v710
        %743 = vst [vmem:[%s222 + $0x60] sm:$0xff] %v711
        %744 = vst [vmem:[%s222 + $0x68] sm:$0xff] %v712
        %745 = vst [vmem:[%s222 + $0x70] sm:$0xff] %v713
        %746 = vst [vmem:[%s222 + $0x78] sm:$0xff] %v714
        %747 = vst [vmem:[%s222 + $0x80] sm:$0xff] %v715
        %748 = vst [vmem:[%s222 + $0x88] sm:$0xff] %v716
        %749 = vst [vmem:[%s222 + $0x90] sm:$0xff] %v717
        %750 = vst [vmem:[%s222 + $0x98] sm:$0xff] %v718
        %751 = vst [vmem:[%s222 + $0xa0] sm:$0xff] %v719
        %752 = vst [vmem:[%s222 + $0xa8] sm:$0xff] %v720
        %753 = vst [vmem:[%s222 + $0xb0] sm:$0xff] %v721
        %754 = vst [vmem:[%s222 + $0xb8] sm:$0xff] %v722
        %755 = vst [vmem:[%s222 + $0xc0] sm:$0xff] %v723
        %756 = vst [vmem:[%s222 + $0xc8] sm:$0xff] %v724
        %757 = vst [vmem:[%s222 + $0xd0] sm:$0xff] %v725
        %758 = vst [vmem:[%s222 + $0xd8] sm:$0xff] %v726
        %759 = vst [vmem:[%s222 + $0xe0] sm:$0xff] %v727
        %760 = vst [vmem:[%s222 + $0xe8] sm:$0xff] %v728
        %761 = vst [vmem:[%s222 + $0xf0] sm:$0xff] %v729
        %762 = vst [vmem:[%s222 + $0xf8] sm:$0xff] %v730
        %s763 = sand.u32 %s97, 1
        %s764 = scalar_lea.sflag [#allocation4], %s763
        %s765 = sand.u32 %s97, 1
        %s766 = smul.addr %s765, 256
        %s767 = scalar_lea.vmem [#allocation8], %s766
        // Predicated region
        $region45: #{tpu_custom_call.1} parent=31 // pred_check
          %p768 = pneg %p107
        $region46: #{tpu_custom_call.1} parent=31 // pred_check_branch
          %770 = sbr.rel (%p768) target = $region48
        $region47: #{tpu_custom_call.1} parent=31 // pred_region
          %s771 = smul.u32 16, %s21
          %773 = vsyncadd %s764, 0
          %s774 = smul.addr %s771, 2
          %s775 = smul.addr %s774, 8
          %s776 = scalar_lea.hbm %s3, %s775
          %s777 = sshll.u32 %s767, 4
          %s778 = int_to_ptr.vmem [resolvable:$true] %s777
          %s779 = sshll.u32 %s776, 4
          %s780 = int_to_ptr.hbm [resolvable:$true] %s779
          %785 = dma.vmem_to_hbm [thread:$0]  %s778, 4096, %s780, %s764, 256, 256, 16
        $region48: #{tpu_custom_call.1} parent=31 // pred_fallthru
          _
      $region32: #{tpu_custom_call.1} parent=5 // pred_fallthru
        _
      %p786 = scmp.le.s32.totalorder 2, %s16
      // Predicated region
      $region49: #{tpu_custom_call.1} parent=5 // pred_check
        %p787 = pneg %p786
      $region50: #{tpu_custom_call.1} parent=5 // pred_check_branch
        %789 = sbr.rel (%p787) target = $region52
      $region51: #{tpu_custom_call.1} parent=5 // pred_region
        %s790 = ssub.s32 %s16, 2
        // Predicated region
        $region53: #{tpu_custom_call.1} parent=51 // pred_check
          %p791 = pneg %p113
        $region54: #{tpu_custom_call.1} parent=51 // pred_check_branch
          %793 = sbr.rel (%p791) target = $region56
        $region55: #{tpu_custom_call.1} parent=51 // pred_region
          %s794 = sand.u32 %s98, 1
          %s795 = scalar_lea.sflag [#allocation4], %s794
          %s796 = sand.u32 %s98, 1
          %s797 = smul.addr %s796, 256
          %s798 = scalar_lea.vmem [#allocation8], %s797
          %800 = dma.done %s795, 4096
        $region56: #{tpu_custom_call.1} parent=51 // pred_fallthru
          _
      $region52: #{tpu_custom_call.1} parent=5 // pred_fallthru
        _
    $region6: #{tpu_custom_call.1} parent=1 // loop_footer
      %s20 = sadd.s32 1, %s16
    $region7: #{tpu_custom_call.1} parent=1 // loop_footer_branch
      %15 = sbr.rel target = $region3
    $region8: #{tpu_custom_call.1} parent=1 // loop_exit
      _
    %801 = vsyncpa [#allocation3], 1
    %s802 = scalar_lea.sflag [#allocation3], 1
    %803 = vsyncpa %s802, 1
    %804 = vsyncpa [#allocation6], 1
    %805 = vsyncpa [#allocation4], 1
    %s806 = scalar_lea.sflag [#allocation4], 1
    %807 = vsyncpa %s806, 1

</llo_original>
